<compile_context>
chip_gen: v5e
topology: v5e:2x2
jax: 0.10.0
libtpu: 0.0.40
codegen_flags: <defaults>
</compile_context>

<pallas_src>
import functools

import jax
import jax.numpy as jnp
from jax.experimental import pallas as pl
from jax.experimental.pallas import tpu as pltpu

SELU_ALPHA = 1.6732632423543772
SELU_SCALE = 1.0507009873554805

_VMEM = pl.BlockSpec(memory_space=pltpu.MemorySpace.VMEM)


def _selu(x):
    return SELU_SCALE * jnp.where(x > 0, x, SELU_ALPHA * (jnp.exp(x) - 1.0))


def _leaky_relu(x, slope):
    return jnp.where(x > 0, x, slope * x)


# --------------------------------------------------------------------------
# Single fused kernel: input head -> (identity SimpleAttLayer) -> residual
# head stack -> last-node fc -> LeakyReLU(0.01).
# --------------------------------------------------------------------------
def _fused_model_kernel(x_ref, bias_ref, w_in_ref, bres_ref, w_fin_ref,
                        fcw_ref, fcb_ref, out_ref, *,
                        res_mode_in, res_mode_fin, n_final, hidden):
    bias = bias_ref[...]                                               # (N, N)

    def attn_head(inp, w_full, f_off, res_mode, bres):
        # One fused MXU pass producing [seq_fts | (res_proj) | f1 | f2 | pad].
        both = jnp.dot(inp, w_full, preferred_element_type=jnp.float32)
        seq_fts = both[:, :hidden]                                     # (N, hidden)
        f1 = both[:, f_off:f_off + 1]                                  # (N, 1)
        f2 = both[:, f_off + 1:f_off + 2]                              # (N, 1)
        logits = _leaky_relu(f1 + f2.T, 0.2) + bias                    # GAT slope 0.2
        m = jnp.max(logits, axis=-1, keepdims=True)
        e = jnp.exp(logits - m)
        # Deferred softmax normalization (EUP reciprocal, no NxN divide).
        inv = pl.reciprocal(jnp.sum(e, axis=-1, keepdims=True), approx=True)
        ret = jnp.dot(e, seq_fts, preferred_element_type=jnp.float32) * inv
        if res_mode == "proj":                                         # Fin != Fout
            ret = ret + both[:, hidden:2 * hidden] + bres
        elif res_mode == "identity":                                   # Fin == Fout
            ret = ret + inp
        return _selu(ret)

    f_off_in = 2 * hidden if res_mode_in == "proj" else hidden
    h = attn_head(x_ref[...], w_in_ref[...], f_off_in, res_mode_in, bres_ref[...])

    # SimpleAttLayer with T == 1 (always the case: x.unsqueeze(1)) is the identity,
    # so it is skipped entirely.
    final_out = h
    for i in range(n_final):                                           # static unroll
        layer_out = attn_head(final_out, w_fin_ref[i], hidden, res_mode_fin, None)
        final_out = final_out + layer_out

    last = final_out[-1:, :]                                           # (1, hidden)
    y = jnp.dot(last, fcw_ref[...], preferred_element_type=jnp.float32) + fcb_ref[...]
    out_ref[...] = _leaky_relu(y, 0.01)                                # (1, 1)


# --------------------------------------------------------------------------
# Host-side helpers: padding, fused-weight construction, bias mat, params.
# --------------------------------------------------------------------------
def _pad_cols(a, multiple):
    pad = (-a.shape[-1]) % multiple
    if pad:
        a = jnp.concatenate([a, jnp.zeros(a.shape[:-1] + (pad,), a.dtype)], axis=-1)
    return a


def _pad_rows(a, rows_to):
    pad = rows_to - a.shape[0]
    if pad:
        a = jnp.concatenate([a, jnp.zeros((pad,) + a.shape[1:], a.dtype)], axis=0)
    return a


def prepare_fused_weights(params, *, residual, in_feat, hidden, n_final):
    p_in = params["attn_input"]
    res_mode_in = ("proj" if (residual and in_feat != hidden)
                   else ("identity" if residual else "none"))
    res_mode_fin = "identity" if residual else "none"

    # Input head: [W1 | (W_res) | W1@a1 | W1@a2], lane-pad to x128, row-pad to fin_pad.
    w1, a1, a2 = p_in["w1"], p_in["a1"], p_in["a2"]
    parts = [w1]
    if res_mode_in == "proj":
        parts.append(p_in["w_res"])
    parts += [w1 @ a1, w1 @ a2]
    fin_pad = -(-in_feat // 8) * 8
    w_in_full = _pad_rows(_pad_cols(jnp.concatenate(parts, axis=1), 128), fin_pad)

    # Final heads: [W | W@a1 | W@a2] per layer (no W_res needed: Fin == Fout).
    fin_mats = []
    for i in range(n_final):
        p = params["attn_final"][i]
        w, a1f, a2f = p["w1"], p["a1"], p["a2"]
        fin_mats.append(_pad_cols(jnp.concatenate([w, w @ a1f, w @ a2f], axis=1), 128))
    if n_final == 0:                       # avoid zero-size stacked array
        fin_mats.append(_pad_cols(jnp.zeros((hidden, hidden + 2), jnp.float32), 128))
    w_fin_full = jnp.stack(fin_mats, axis=0)

    bres_in = (p_in["b_res"] if res_mode_in == "proj"
               else jnp.zeros((1, hidden), jnp.float32))
    return dict(w_in_full=w_in_full, w_fin_full=w_fin_full, bres_in=bres_in,
                res_mode_in=res_mode_in, res_mode_fin=res_mode_fin, fin_pad=fin_pad)


def build_bias_mat(edge_index, n):
    adj = jnp.zeros((n, n), jnp.float32)
    adj = adj.at[edge_index[0], edge_index[1]].set(1.0)
    adj = adj + jnp.eye(n, dtype=jnp.float32)           # self loops
    adj = jnp.minimum(adj, 1.0)
    return (1.0 - adj) * (-1e9)


def init_attn_head_params(key, fin, fout, with_res_proj):
    k1, k2, k3, k4 = jax.random.split(key, 4)
    p = {
        "w1": 0.1 * jax.random.normal(k1, (fin, fout), jnp.float32),
        "a1": 0.1 * jax.random.normal(k2, (fout, 1), jnp.float32),
        "a2": 0.1 * jax.random.normal(k3, (fout, 1), jnp.float32),
    }
    if with_res_proj:
        p["w_res"] = 0.1 * jax.random.normal(k4, (fin, fout), jnp.float32)
        p["b_res"] = jnp.zeros((1, fout), jnp.float32)
    return p


def init_model_params(key, n_layer, *, residual, in_feat=7, hidden=128):
    # SimpleAttLayer parameters (w_omega/b_omega/u_omega) are omitted: with T == 1
    # the layer is the identity and they cannot affect the output.
    keys = jax.random.split(key, n_layer + 2)
    return {
        "attn_input": init_attn_head_params(keys[0], in_feat, hidden,
                                            with_res_proj=residual and in_feat != hidden),
        "attn_final": [init_attn_head_params(keys[1 + i], hidden, hidden,
                                             with_res_proj=False)
                       for i in range(n_layer - 1)],
        "fc_w": 0.1 * jax.random.normal(keys[-1], (hidden, 1), jnp.float32),
        "fc_b": jnp.zeros((1, 1), jnp.float32),
    }


def model_forward(params, inputs_input, edge_index_list, *, residual, n_layer):
    n, fin = inputs_input.shape
    hidden = params["fc_w"].shape[0]
    n_final = n_layer - 1                                   # == self.n_layer in PyTorch

    bias_mat = build_bias_mat(edge_index_list[0], n)
    fw = prepare_fused_weights(params, residual=residual, in_feat=fin,
                               hidden=hidden, n_final=n_final)
    x_pad = _pad_cols(inputs_input, fw["fin_pad"])          # (N, fin_pad)

    kernel = functools.partial(_fused_model_kernel,
                               res_mode_in=fw["res_mode_in"],
                               res_mode_fin=fw["res_mode_fin"],
                               n_final=n_final, hidden=hidden)
    y = pl.pallas_call(
        kernel,
        out_shape=jax.ShapeDtypeStruct((1, 1), jnp.float32),
        in_specs=[_VMEM] * 7,
        out_specs=_VMEM,
    )(x_pad, bias_mat, fw["w_in_full"], fw["bres_in"], fw["w_fin_full"],
      params["fc_w"], params["fc_b"])
    return y[0]                                             # shape (1,) == fc(last_node)


if __name__ == "__main__":
    key = jax.random.PRNGKey(0)
    k_x, k_p = jax.random.split(key)

    N_NODES, IN_FEAT, N_LAYER, RESIDUAL = 8, 7, 2, True

    inputs_input = jax.random.normal(k_x, (N_NODES, IN_FEAT), jnp.float32)
    # Deterministic small graph: bidirectional ring + a couple of chords.
    src = jnp.array([0, 1, 2, 3, 4, 5, 6, 7, 1, 2, 3, 4, 5, 6, 7, 0, 0, 4, 2, 6],
                    dtype=jnp.int32)
    dst = jnp.array([1, 2, 3, 4, 5, 6, 7, 0, 0, 1, 2, 3, 4, 5, 6, 7, 4, 0, 6, 2],
                    dtype=jnp.int32)
    edge_index = jnp.stack([src, dst], axis=0)              # (2, E)
    edge_index_list = [edge_index]

    params = init_model_params(k_p, N_LAYER, residual=RESIDUAL, in_feat=IN_FEAT)

    fwd = jax.jit(functools.partial(model_forward, residual=RESIDUAL, n_layer=N_LAYER))
    out = fwd(params, inputs_input, edge_index_list)
    out = jax.block_until_ready(out)
    assert out.shape == (1,), out.shape
    print("KERNEL_OK")
</pallas_src>

<mosaic_0001>
module attributes {stable_mosaic.version = 11 : i64} {
  func.func @_fused_model_kernel(%arg0: memref<8x8xf32, #tpu.memory_space<vmem>>, %arg1: memref<8x8xf32, #tpu.memory_space<vmem>>, %arg2: memref<8x384xf32, #tpu.memory_space<vmem>>, %arg3: memref<1x128xf32, #tpu.memory_space<vmem>>, %arg4: memref<1x128x256xf32, #tpu.memory_space<vmem>>, %arg5: memref<128x1xf32, #tpu.memory_space<vmem>>, %arg6: memref<1x1xf32, #tpu.memory_space<vmem>>, %arg7: memref<1x1xf32, #tpu.memory_space<vmem>>) attributes {dimension_semantics = [], scalar_prefetch = 0 : i64, scratch_operands = 0 : i64, tpu.core_type = #tpu.core_type<tc>} {
    %c0 = arith.constant 0 : index
    %c0_0 = arith.constant 0 : index
    %0 = vector.load %arg1[%c0, %c0_0] : memref<8x8xf32, #tpu.memory_space<vmem>>, vector<8x8xf32>
    %c0_1 = arith.constant 0 : index
    %c0_2 = arith.constant 0 : index
    %1 = vector.load %arg0[%c0_1, %c0_2] : memref<8x8xf32, #tpu.memory_space<vmem>>, vector<8x8xf32>
    %c0_3 = arith.constant 0 : index
    %c0_4 = arith.constant 0 : index
    %2 = vector.load %arg2[%c0_3, %c0_4] : memref<8x384xf32, #tpu.memory_space<vmem>>, vector<8x384xf32>
    %c0_5 = arith.constant 0 : index
    %c0_6 = arith.constant 0 : index
    %3 = vector.load %arg3[%c0_5, %c0_6] : memref<1x128xf32, #tpu.memory_space<vmem>>, vector<1x128xf32>
    %cst = arith.constant dense<0.000000e+00> : vector<8x384xf32>
    %4 = tpu.matmul %1, %2, %cst {dimension_numbers = #tpu.dot_dimension_numbers<[1], [0], [0], [1], [0, 0, 1, 1], [], []>} : vector<8x8xf32>, vector<8x384xf32>, vector<8x384xf32> -> vector<8x384xf32>
    %5 = vector.extract_strided_slice %4 {offsets = [0, 0], sizes = [8, 128], strides = [1, 1]} : vector<8x384xf32> to vector<8x128xf32>
    %6 = vector.extract_strided_slice %4 {offsets = [0, 256], sizes = [8, 1], strides = [1, 1]} : vector<8x384xf32> to vector<8x1xf32>
    %7 = vector.extract_strided_slice %4 {offsets = [0, 257], sizes = [8, 1], strides = [1, 1]} : vector<8x384xf32> to vector<8x1xf32>
    %8 = tpu.transpose %7, [1, 0] : vector<8x1xf32> -> vector<1x8xf32>
    %9 = vector.broadcast %6 : vector<8x1xf32> to vector<8x8xf32>
    %10 = vector.broadcast %8 : vector<1x8xf32> to vector<8x8xf32>
    %11 = arith.addf %9, %10 : vector<8x8xf32>
    %cst_7 = arith.constant 0.000000e+00 : f32
    %12 = vector.broadcast %cst_7 : f32 to vector<8x8xf32>
    %13 = arith.cmpf ogt, %11, %12 : vector<8x8xf32>
    %cst_8 = arith.constant 2.000000e-01 : f32
    %14 = vector.broadcast %cst_8 : f32 to vector<8x8xf32>
    %15 = arith.mulf %14, %11 : vector<8x8xf32>
    %16 = arith.select %13, %11, %15 : vector<8x8xi1>, vector<8x8xf32>
    %17 = arith.addf %16, %0 : vector<8x8xf32>
    %cst_9 = arith.constant dense<0xFF800000> : vector<8xf32>
    %18 = vector.multi_reduction <maximumf>, %17, %cst_9 [1] : vector<8x8xf32> to vector<8xf32>
    %19 = vector.shape_cast %18 : vector<8xf32> to vector<8x1xf32>
    %20 = vector.broadcast %19 : vector<8x1xf32> to vector<8x8xf32>
    %21 = arith.subf %17, %20 : vector<8x8xf32>
    %22 = math.exp %21 : vector<8x8xf32>
    %cst_10 = arith.constant dense<0.000000e+00> : vector<8xf32>
    %23 = vector.multi_reduction <add>, %22, %cst_10 [1] : vector<8x8xf32> to vector<8xf32>
    %24 = vector.shape_cast %23 : vector<8xf32> to vector<8x1xf32>
    %25 = tpu.reciprocal %24 {approx = true} : vector<8x1xf32> -> vector<8x1xf32>
    %cst_11 = arith.constant dense<0.000000e+00> : vector<8x128xf32>
    %26 = tpu.matmul %22, %5, %cst_11 {dimension_numbers = #tpu.dot_dimension_numbers<[1], [0], [0], [1], [0, 0, 1, 1], [], []>} : vector<8x8xf32>, vector<8x128xf32>, vector<8x128xf32> -> vector<8x128xf32>
    %27 = vector.broadcast %25 : vector<8x1xf32> to vector<8x128xf32>
    %28 = arith.mulf %26, %27 : vector<8x128xf32>
    %29 = vector.extract_strided_slice %4 {offsets = [0, 128], sizes = [8, 128], strides = [1, 1]} : vector<8x384xf32> to vector<8x128xf32>
    %30 = arith.addf %28, %29 : vector<8x128xf32>
    %31 = vector.broadcast %3 : vector<1x128xf32> to vector<8x128xf32>
    %32 = arith.addf %30, %31 : vector<8x128xf32>
    %cst_12 = arith.constant 0.000000e+00 : f32
    %33 = vector.broadcast %cst_12 : f32 to vector<8x128xf32>
    %34 = arith.cmpf ogt, %32, %33 : vector<8x128xf32>
    %35 = math.exp %32 : vector<8x128xf32>
    %cst_13 = arith.constant 1.000000e+00 : f32
    %36 = vector.broadcast %cst_13 : f32 to vector<8x128xf32>
    %37 = arith.subf %35, %36 : vector<8x128xf32>
    %cst_14 = arith.constant 1.67326319 : f32
    %38 = vector.broadcast %cst_14 : f32 to vector<8x128xf32>
    %39 = arith.mulf %38, %37 : vector<8x128xf32>
    %40 = arith.select %34, %32, %39 : vector<8x128xi1>, vector<8x128xf32>
    %cst_15 = arith.constant 1.05070102 : f32
    %41 = vector.broadcast %cst_15 : f32 to vector<8x128xf32>
    %42 = arith.mulf %41, %40 : vector<8x128xf32>
    %c0_16 = arith.constant 0 : index
    %c0_17 = arith.constant 0 : index
    %c0_18 = arith.constant 0 : index
    %43 = vector.load %arg4[%c0_16, %c0_17, %c0_18] : memref<1x128x256xf32, #tpu.memory_space<vmem>>, vector<1x128x256xf32>
    %44 = vector.shape_cast %43 : vector<1x128x256xf32> to vector<128x256xf32>
    %cst_19 = arith.constant dense<0.000000e+00> : vector<8x256xf32>
    %45 = tpu.matmul %42, %44, %cst_19 {dimension_numbers = #tpu.dot_dimension_numbers<[1], [0], [0], [1], [0, 0, 1, 1], [], []>} : vector<8x128xf32>, vector<128x256xf32>, vector<8x256xf32> -> vector<8x256xf32>
    %46 = vector.extract_strided_slice %45 {offsets = [0, 0], sizes = [8, 128], strides = [1, 1]} : vector<8x256xf32> to vector<8x128xf32>
    %47 = vector.extract_strided_slice %45 {offsets = [0, 128], sizes = [8, 1], strides = [1, 1]} : vector<8x256xf32> to vector<8x1xf32>
    %48 = vector.extract_strided_slice %45 {offsets = [0, 129], sizes = [8, 1], strides = [1, 1]} : vector<8x256xf32> to vector<8x1xf32>
    %49 = tpu.transpose %48, [1, 0] : vector<8x1xf32> -> vector<1x8xf32>
    %50 = vector.broadcast %47 : vector<8x1xf32> to vector<8x8xf32>
    %51 = vector.broadcast %49 : vector<1x8xf32> to vector<8x8xf32>
    %52 = arith.addf %50, %51 : vector<8x8xf32>
    %cst_20 = arith.constant 0.000000e+00 : f32
    %53 = vector.broadcast %cst_20 : f32 to vector<8x8xf32>
    %54 = arith.cmpf ogt, %52, %53 : vector<8x8xf32>
    %cst_21 = arith.constant 2.000000e-01 : f32
    %55 = vector.broadcast %cst_21 : f32 to vector<8x8xf32>
    %56 = arith.mulf %55, %52 : vector<8x8xf32>
    %57 = arith.select %54, %52, %56 : vector<8x8xi1>, vector<8x8xf32>
    %58 = arith.addf %57, %0 : vector<8x8xf32>
    %cst_22 = arith.constant dense<0xFF800000> : vector<8xf32>
    %59 = vector.multi_reduction <maximumf>, %58, %cst_22 [1] : vector<8x8xf32> to vector<8xf32>
    %60 = vector.shape_cast %59 : vector<8xf32> to vector<8x1xf32>
    %61 = vector.broadcast %60 : vector<8x1xf32> to vector<8x8xf32>
    %62 = arith.subf %58, %61 : vector<8x8xf32>
    %63 = math.exp %62 : vector<8x8xf32>
    %cst_23 = arith.constant dense<0.000000e+00> : vector<8xf32>
    %64 = vector.multi_reduction <add>, %63, %cst_23 [1] : vector<8x8xf32> to vector<8xf32>
    %65 = vector.shape_cast %64 : vector<8xf32> to vector<8x1xf32>
    %66 = tpu.reciprocal %65 {approx = true} : vector<8x1xf32> -> vector<8x1xf32>
    %cst_24 = arith.constant dense<0.000000e+00> : vector<8x128xf32>
    %67 = tpu.matmul %63, %46, %cst_24 {dimension_numbers = #tpu.dot_dimension_numbers<[1], [0], [0], [1], [0, 0, 1, 1], [], []>} : vector<8x8xf32>, vector<8x128xf32>, vector<8x128xf32> -> vector<8x128xf32>
    %68 = vector.broadcast %66 : vector<8x1xf32> to vector<8x128xf32>
    %69 = arith.mulf %67, %68 : vector<8x128xf32>
    %70 = arith.addf %69, %42 : vector<8x128xf32>
    %cst_25 = arith.constant 0.000000e+00 : f32
    %71 = vector.broadcast %cst_25 : f32 to vector<8x128xf32>
    %72 = arith.cmpf ogt, %70, %71 : vector<8x128xf32>
    %73 = math.exp %70 : vector<8x128xf32>
    %cst_26 = arith.constant 1.000000e+00 : f32
    %74 = vector.broadcast %cst_26 : f32 to vector<8x128xf32>
    %75 = arith.subf %73, %74 : vector<8x128xf32>
    %cst_27 = arith.constant 1.67326319 : f32
    %76 = vector.broadcast %cst_27 : f32 to vector<8x128xf32>
    %77 = arith.mulf %76, %75 : vector<8x128xf32>
    %78 = arith.select %72, %70, %77 : vector<8x128xi1>, vector<8x128xf32>
    %cst_28 = arith.constant 1.05070102 : f32
    %79 = vector.broadcast %cst_28 : f32 to vector<8x128xf32>
    %80 = arith.mulf %79, %78 : vector<8x128xf32>
    %81 = arith.addf %42, %80 : vector<8x128xf32>
    %82 = vector.extract_strided_slice %81 {offsets = [7, 0], sizes = [1, 128], strides = [1, 1]} : vector<8x128xf32> to vector<1x128xf32>
    %c0_29 = arith.constant 0 : index
    %c0_30 = arith.constant 0 : index
    %83 = vector.load %arg5[%c0_29, %c0_30] : memref<128x1xf32, #tpu.memory_space<vmem>>, vector<128x1xf32>
    %cst_31 = arith.constant dense<0.000000e+00> : vector<1x1xf32>
    %84 = tpu.matmul %82, %83, %cst_31 {dimension_numbers = #tpu.dot_dimension_numbers<[1], [0], [0], [1], [0, 0, 1, 1], [], []>} : vector<1x128xf32>, vector<128x1xf32>, vector<1x1xf32> -> vector<1x1xf32>
    %c0_32 = arith.constant 0 : index
    %c0_33 = arith.constant 0 : index
    %85 = vector.load %arg6[%c0_32, %c0_33] : memref<1x1xf32, #tpu.memory_space<vmem>>, vector<1x1xf32>
    %86 = arith.addf %84, %85 : vector<1x1xf32>
    %cst_34 = arith.constant 0.000000e+00 : f32
    %87 = vector.broadcast %cst_34 : f32 to vector<1x1xf32>
    %88 = arith.cmpf ogt, %86, %87 : vector<1x1xf32>
    %cst_35 = arith.constant 0.00999999977 : f32
    %89 = vector.broadcast %cst_35 : f32 to vector<1x1xf32>
    %90 = arith.mulf %89, %86 : vector<1x1xf32>
    %91 = arith.select %88, %86, %90 : vector<1x1xi1>, vector<1x1xf32>
    %c0_36 = arith.constant 0 : index
    %c0_37 = arith.constant 0 : index
    %92 = vector.load %arg7[%c0_36, %c0_37] : memref<1x1xf32, #tpu.memory_space<vmem>>, vector<1x1xf32>
    tpu.vector_store %arg7[%c0_36, %c0_37], %91 {strides = array<i32>} : memref<1x1xf32, #tpu.memory_space<vmem>>, vector<1x1xf32>,
    return
  }
}

</mosaic_0001>

<llo_original>
// kernel: model_forward.1
$region0: #{model_forward.1}
  #allocation0 [shape = 'u32[]', space=smem, size = 0x4, offset = 0x4, fixed_abs, tag = 'smem constant byte address 0x4 - core index']
  #allocation1 [shape = 'u32[72,128]{1,0:T(1,128)}', space=vmem, size = 0x9000, scoped, tag = 'internal scratch']
  #allocation2 [shape = 'f32[1,1]{1,0:T(1,128)S(1)}', space=vmem, size = 0x200, scoped, tag = 'scoped memory for model_forward.1']
  %s0 = inlined_call_operand.vmem [shape: f32[8,8], index: 0, kind: input, shape index: {}]
  %s1 = inlined_call_operand.vmem [shape: f32[8,8], index: 1, kind: input, shape index: {}]
  %s2 = inlined_call_operand.vmem [shape: f32[8,384], index: 2, kind: input, shape index: {}]
  %s3 = inlined_call_operand.vmem [shape: f32[1,128], index: 3, kind: input, shape index: {}]
  %s4 = inlined_call_operand.vmem [shape: f32[1,128,256], index: 4, kind: input, shape index: {}]
  %s5 = inlined_call_operand.vmem [shape: f32[128,1], index: 5, kind: input, shape index: {}]
  %s6 = inlined_call_operand.<no memory space> [shape: f32[1,1], index: 6, kind: input, shape index: {}]
  %s7 = inlined_call_operand.hbm [shape: f32[1,1], index: 7, kind: output, shape index: {}]
  %s8 = sld [smem:[#allocation0]]
  $region38: #{model_forward.1} parent=0
    _
  %s10 = ssub.s32 1, %s8
  %s11 = scalar_select 0, %s10, %s8
  %v12 = vstv %s6
  %13 = vst [vmem:[#allocation2] sm:$0x1] %v12
  $region1: #{model_forward.1} parent=0
    #allocation3 [shape = 'u8[512]{0}', space=vmem, size = 0x400, scoped, tag = 'output window, operand 0, single buffered']
    #allocation4 [shape = 's32[1]{0}', space=sflag, size = 0x4, scoped, tag = 'scoped memory for model_forward.1']
    %14 = vsyncpa [#allocation4], 0
    // Predicated region
    $region2: #{model_forward.1} parent=1 // pred_check
      _
    $region3: #{model_forward.1} parent=1 // pred_check_branch
      %16 = sbr.rel (0) target = $region5
    $region4: #{model_forward.1} parent=1 // pred_region
      _
    $region5: #{model_forward.1} parent=1 // pred_fallthru
      _
    // Predicated region
    $region6: #{model_forward.1} parent=1 // pred_check
      _
    $region7: #{model_forward.1} parent=1 // pred_check_branch
      %18 = sbr.rel (0) target = $region9
    $region8: #{model_forward.1} parent=1 // pred_region
      _
    $region9: #{model_forward.1} parent=1 // pred_fallthru
      _
    // Predicated region
    $region10: #{model_forward.1} parent=1 // pred_check
      _
    $region11: #{model_forward.1} parent=1 // pred_check_branch
      %20 = sbr.rel (0) target = $region13
    $region12: #{model_forward.1} parent=1 // pred_region
      _
    $region13: #{model_forward.1} parent=1 // pred_fallthru
      _
    // Predicated region
    $region14: #{model_forward.1} parent=1 // pred_check
      _
    $region15: #{model_forward.1} parent=1 // pred_check_branch
      %22 = sbr.rel (0) target = $region17
    $region16: #{model_forward.1} parent=1 // pred_region
      _
    $region17: #{model_forward.1} parent=1 // pred_fallthru
      _
    // Predicated region
    $region18: #{model_forward.1} parent=1 // pred_check
      _
    $region19: #{model_forward.1} parent=1 // pred_check_branch
      %24 = sbr.rel (0) target = $region21
    $region20: #{model_forward.1} parent=1 // pred_region
      _
    $region21: #{model_forward.1} parent=1 // pred_fallthru
      _
    // Predicated region
    $region22: #{model_forward.1} parent=1 // pred_check
      _
    $region23: #{model_forward.1} parent=1 // pred_check_branch
      %26 = sbr.rel (0) target = $region25
    $region24: #{model_forward.1} parent=1 // pred_region
      _
    $region25: #{model_forward.1} parent=1 // pred_fallthru
      _
    // Predicated region
    $region26: #{model_forward.1} parent=1 // pred_check
      _
    $region27: #{model_forward.1} parent=1 // pred_check_branch
      %28 = sbr.rel (0) target = $region29
    $region28: #{model_forward.1} parent=1 // pred_region
      _
    $region29: #{model_forward.1} parent=1 // pred_fallthru
      _
    %v29 = vld [vmem:[%s1] sm:$0xff]
    %v30 = vld [vmem:[%s0] sm:$0xff]
    %v31 = vld [vmem:[%s2] sm:$0xff]
    %v32 = vld [vmem:[%s2 + $0x8] sm:$0xff]
    %v33 = vld [vmem:[%s2 + $0x10] sm:$0xff]
    %v34 = vld [vmem:[%s3] sm:$0x1]
    %vm35 = vcmask 64512
    %v37 = vsel %vm35, %v30, 0
    %39 = vmatpush.msra.mxu0 0.0
    %40 = vmatpush.msra.mxu0 0.0
    %41 = vmatpush.msra.mxu0 0.0
    %42 = vmatpush.msra.mxu0 0.0
    %43 = vmatpush.msra.mxu0 0.0
    %44 = vmatpush.msra.mxu0 0.0
    %45 = vmatpush.msra.mxu0 0.0
    %46 = vmatpush.msra.mxu0 0.0
    %47 = vmatpush.msra.mxu0 0.0
    %48 = vmatpush.msra.mxu0 0.0
    %49 = vmatpush.msra.mxu0 0.0
    %50 = vmatpush.msra.mxu0 0.0
    %51 = vmatpush.msra.mxu0 0.0
    %52 = vmatpush.msra.mxu0 0.0
    %53 = vmatpush.msra.mxu0 0.0
    %54 = vmatpush.msra.mxu0 %v31
    %55 = vmatmul.f32.gmra.mxu0 %v37
    %v56 = vpop.f32.mrf.mxu0
    %v57 = vadd.f32 0.0, %v56
    %58 = vdwg.mxu0
    %59 = vmatpush.msra.mxu0 0.0
    %60 = vmatpush.msra.mxu0 0.0
    %61 = vmatpush.msra.mxu0 0.0
    %62 = vmatpush.msra.mxu0 0.0
    %63 = vmatpush.msra.mxu0 0.0
    %64 = vmatpush.msra.mxu0 0.0
    %65 = vmatpush.msra.mxu0 0.0
    %66 = vmatpush.msra.mxu0 0.0
    %67 = vmatpush.msra.mxu0 0.0
    %68 = vmatpush.msra.mxu0 0.0
    %69 = vmatpush.msra.mxu0 0.0
    %70 = vmatpush.msra.mxu0 0.0
    %71 = vmatpush.msra.mxu0 0.0
    %72 = vmatpush.msra.mxu0 0.0
    %73 = vmatpush.msra.mxu0 0.0
    %74 = vmatpush.msra.mxu0 %v32
    %75 = vmatmul.f32.gmra.mxu0 %v37
    %v76 = vpop.f32.mrf.mxu0
    %v77 = vadd.f32 0.0, %v76
    %78 = vdwg.mxu0
    %79 = vmatpush.msra.mxu0 0.0
    %80 = vmatpush.msra.mxu0 0.0
    %81 = vmatpush.msra.mxu0 0.0
    %82 = vmatpush.msra.mxu0 0.0
    %83 = vmatpush.msra.mxu0 0.0
    %84 = vmatpush.msra.mxu0 0.0
    %85 = vmatpush.msra.mxu0 0.0
    %86 = vmatpush.msra.mxu0 0.0
    %87 = vmatpush.msra.mxu0 0.0
    %88 = vmatpush.msra.mxu0 0.0
    %89 = vmatpush.msra.mxu0 0.0
    %90 = vmatpush.msra.mxu0 0.0
    %91 = vmatpush.msra.mxu0 0.0
    %92 = vmatpush.msra.mxu0 0.0
    %93 = vmatpush.msra.mxu0 0.0
    %94 = vmatpush.msra.mxu0 %v33
    %95 = vmatmul.f32.gmra.mxu0 %v37
    %v96 = vpop.f32.mrf.mxu0
    %v97 = vadd.f32 0.0, %v96
    %98 = vdwg.mxu0
    %100 = vrot.lane.b32.xlu0 %v97, 127
    %v101 = vpop.permute.xlu0 %100
    %103 = vxpose.xlu0.b32.start [1/16] %v101, 128
    %104 = vxpose.xlu0.b32.cont [2/16] 0.0, 128
    %105 = vxpose.xlu0.b32.cont [3/16] 0.0, 128
    %106 = vxpose.xlu0.b32.cont [4/16] 0.0, 128
    %107 = vxpose.xlu0.b32.cont [5/16] 0.0, 128
    %108 = vxpose.xlu0.b32.cont [6/16] 0.0, 128
    %109 = vxpose.xlu0.b32.cont [7/16] 0.0, 128
    %110 = vxpose.xlu0.b32.cont [8/16] 0.0, 128
    %111 = vxpose.xlu0.b32.cont [9/16] 0.0, 128
    %112 = vxpose.xlu0.b32.cont [10/16] 0.0, 128
    %113 = vxpose.xlu0.b32.cont [11/16] 0.0, 128
    %114 = vxpose.xlu0.b32.cont [12/16] 0.0, 128
    %115 = vxpose.xlu0.b32.cont [13/16] 0.0, 128
    %116 = vxpose.xlu0.b32.cont [14/16] 0.0, 128
    %117 = vxpose.xlu0.b32.cont [15/16] 0.0, 128
    %118 = vxpose.xlu0.b32.end [16/16] 0.0, 128
    %v119 = vpop.trf.xlu0
    %v120 = vpop.trf.xlu0
    %v121 = vpop.trf.xlu0
    %v122 = vpop.trf.xlu0
    %v123 = vpop.trf.xlu0
    %v124 = vpop.trf.xlu0
    %v125 = vpop.trf.xlu0
    %v126 = vpop.trf.xlu0
    %v127 = vpop.trf.xlu0
    %v128 = vpop.trf.xlu0
    %v129 = vpop.trf.xlu0
    %v130 = vpop.trf.xlu0
    %v131 = vpop.trf.xlu0
    %v132 = vpop.trf.xlu0
    %v133 = vpop.trf.xlu0
    %v134 = vpop.trf.xlu0
    %135 = vset.pattern.permute.xlu0 0
    %136 = vperm.xlu0 %135, %v97
    %v137 = vpop.permute.xlu0 %136
    %v139 = vperm.slane %v119, 0
    %v140 = vadd.f32 %v137, %v139
    %vm141 = vcmp.gt.f32.partialorder %v140, 0.0
    %v142 = vmul.f32 %v140, 0.2
    %v143 = vsel %vm141, %v140, %v142
    %v144 = vadd.f32 %v143, %v29
    %v145 = vsel %vm35, %v144, -inf
    %146 = vmax.xlane.f32.xlu0 %v145
    %v147 = vpop.xlane.xlu0 %146
    %v148 = vsub.f32 %v144, %v147
    %v149 = vmul.f32 %v148, 1.442695
    %v150 = vpow.pop %v149
    %v151 = vsel %vm35, %v150, 0.0
    %152 = vadd.xlane.f32.xlu0 %v151
    %v153 = vpop.xlane.xlu0 %152
    %v154 = vrcp.pop %v153
    %v156 = vsel %vm35, %v150, 0
    %158 = vmatpush.msra.mxu0 0.0
    %159 = vmatpush.msra.mxu0 0.0
    %160 = vmatpush.msra.mxu0 0.0
    %161 = vmatpush.msra.mxu0 0.0
    %162 = vmatpush.msra.mxu0 0.0
    %163 = vmatpush.msra.mxu0 0.0
    %164 = vmatpush.msra.mxu0 0.0
    %165 = vmatpush.msra.mxu0 0.0
    %166 = vmatpush.msra.mxu0 0.0
    %167 = vmatpush.msra.mxu0 0.0
    %168 = vmatpush.msra.mxu0 0.0
    %169 = vmatpush.msra.mxu0 0.0
    %170 = vmatpush.msra.mxu0 0.0
    %171 = vmatpush.msra.mxu0 0.0
    %172 = vmatpush.msra.mxu0 0.0
    %173 = vmatpush.msra.mxu0 %v57
    %174 = vmatmul.f32.gmra.mxu0 %v156
    %v175 = vpop.f32.mrf.mxu0
    %v176 = vadd.f32 0.0, %v175
    %177 = vdwg.mxu0
    %v178 = vmul.f32 %v176, %v154
    %v179 = vadd.f32 %v178, %v77
    %v181 = vperm.slane %v34, 0
    %v183 = vadd.f32 %v179, %v181
    %vm184 = vcmp.gt.f32.partialorder %v183, 0.0
    %v185 = vmul.f32 %v183, 1.442695
    %v186 = vpow.pop %v185
    %v187 = vsub.f32 %v186, 1.0
    %v188 = vmul.f32 %v187, 1.6732632
    %v189 = vsel %vm184, %v183, %v188
    %v190 = vmul.f32 %v189, 1.050701
    %v191 = vld [vmem:[%s4] sm:$0xff]
    %v192 = vld [vmem:[%s4 + $0x8] sm:$0xff]
    %v193 = vld [vmem:[%s4 + $0x10] sm:$0xff]
    %v194 = vld [vmem:[%s4 + $0x18] sm:$0xff]
    %v195 = vld [vmem:[%s4 + $0x20] sm:$0xff]
    %v196 = vld [vmem:[%s4 + $0x28] sm:$0xff]
    %v197 = vld [vmem:[%s4 + $0x30] sm:$0xff]
    %v198 = vld [vmem:[%s4 + $0x38] sm:$0xff]
    %v199 = vld [vmem:[%s4 + $0x40] sm:$0xff]
    %v200 = vld [vmem:[%s4 + $0x48] sm:$0xff]
    %v201 = vld [vmem:[%s4 + $0x50] sm:$0xff]
    %v202 = vld [vmem:[%s4 + $0x58] sm:$0xff]
    %v203 = vld [vmem:[%s4 + $0x60] sm:$0xff]
    %v204 = vld [vmem:[%s4 + $0x68] sm:$0xff]
    %v205 = vld [vmem:[%s4 + $0x70] sm:$0xff]
    %v206 = vld [vmem:[%s4 + $0x78] sm:$0xff]
    %v207 = vld [vmem:[%s4 + $0x80] sm:$0xff]
    %v208 = vld [vmem:[%s4 + $0x88] sm:$0xff]
    %v209 = vld [vmem:[%s4 + $0x90] sm:$0xff]
    %v210 = vld [vmem:[%s4 + $0x98] sm:$0xff]
    %v211 = vld [vmem:[%s4 + $0xa0] sm:$0xff]
    %v212 = vld [vmem:[%s4 + $0xa8] sm:$0xff]
    %v213 = vld [vmem:[%s4 + $0xb0] sm:$0xff]
    %v214 = vld [vmem:[%s4 + $0xb8] sm:$0xff]
    %v215 = vld [vmem:[%s4 + $0xc0] sm:$0xff]
    %v216 = vld [vmem:[%s4 + $0xc8] sm:$0xff]
    %v217 = vld [vmem:[%s4 + $0xd0] sm:$0xff]
    %v218 = vld [vmem:[%s4 + $0xd8] sm:$0xff]
    %v219 = vld [vmem:[%s4 + $0xe0] sm:$0xff]
    %v220 = vld [vmem:[%s4 + $0xe8] sm:$0xff]
    %v221 = vld [vmem:[%s4 + $0xf0] sm:$0xff]
    %v222 = vld [vmem:[%s4 + $0xf8] sm:$0xff]
    %223 = vmatpush.msra.mxu0 %v221
    %224 = vmatpush.msra.mxu0 %v219
    %225 = vmatpush.msra.mxu0 %v217
    %226 = vmatpush.msra.mxu0 %v215
    %227 = vmatpush.msra.mxu0 %v213
    %228 = vmatpush.msra.mxu0 %v211
    %229 = vmatpush.msra.mxu0 %v209
    %230 = vmatpush.msra.mxu0 %v207
    %231 = vmatpush.msra.mxu0 %v205
    %232 = vmatpush.msra.mxu0 %v203
    %233 = vmatpush.msra.mxu0 %v201
    %234 = vmatpush.msra.mxu0 %v199
    %235 = vmatpush.msra.mxu0 %v197
    %236 = vmatpush.msra.mxu0 %v195
    %237 = vmatpush.msra.mxu0 %v193
    %238 = vmatpush.msra.mxu0 %v191
    %239 = vmatmul.f32.gmra.mxu0 %v190
    %v240 = vpop.f32.mrf.mxu0
    %v241 = vadd.f32 0.0, %v240
    %242 = vdwg.mxu0
    %243 = vmatpush.msra.mxu0 %v222
    %244 = vmatpush.msra.mxu0 %v220
    %245 = vmatpush.msra.mxu0 %v218
    %246 = vmatpush.msra.mxu0 %v216
    %247 = vmatpush.msra.mxu0 %v214
    %248 = vmatpush.msra.mxu0 %v212
    %249 = vmatpush.msra.mxu0 %v210
    %250 = vmatpush.msra.mxu0 %v208
    %251 = vmatpush.msra.mxu0 %v206
    %252 = vmatpush.msra.mxu0 %v204
    %253 = vmatpush.msra.mxu0 %v202
    %254 = vmatpush.msra.mxu0 %v200
    %255 = vmatpush.msra.mxu0 %v198
    %256 = vmatpush.msra.mxu0 %v196
    %257 = vmatpush.msra.mxu0 %v194
    %258 = vmatpush.msra.mxu0 %v192
    %259 = vmatmul.f32.gmra.mxu0 %v190
    %v260 = vpop.f32.mrf.mxu0
    %v261 = vadd.f32 0.0, %v260
    %262 = vdwg.mxu0
    %264 = vrot.lane.b32.xlu0 %v261, 127
    %v265 = vpop.permute.xlu0 %264
    %267 = vxpose.xlu0.b32.start [1/16] %v265, 128
    %268 = vxpose.xlu0.b32.cont [2/16] 0.0, 128
    %269 = vxpose.xlu0.b32.cont [3/16] 0.0, 128
    %270 = vxpose.xlu0.b32.cont [4/16] 0.0, 128
    %271 = vxpose.xlu0.b32.cont [5/16] 0.0, 128
    %272 = vxpose.xlu0.b32.cont [6/16] 0.0, 128
    %273 = vxpose.xlu0.b32.cont [7/16] 0.0, 128
    %274 = vxpose.xlu0.b32.cont [8/16] 0.0, 128
    %275 = vxpose.xlu0.b32.cont [9/16] 0.0, 128
    %276 = vxpose.xlu0.b32.cont [10/16] 0.0, 128
    %277 = vxpose.xlu0.b32.cont [11/16] 0.0, 128
    %278 = vxpose.xlu0.b32.cont [12/16] 0.0, 128
    %279 = vxpose.xlu0.b32.cont [13/16] 0.0, 128
    %280 = vxpose.xlu0.b32.cont [14/16] 0.0, 128
    %281 = vxpose.xlu0.b32.cont [15/16] 0.0, 128
    %282 = vxpose.xlu0.b32.end [16/16] 0.0, 128
    %v283 = vpop.trf.xlu0
    %v284 = vpop.trf.xlu0
    %v285 = vpop.trf.xlu0
    %v286 = vpop.trf.xlu0
    %v287 = vpop.trf.xlu0
    %v288 = vpop.trf.xlu0
    %v289 = vpop.trf.xlu0
    %v290 = vpop.trf.xlu0
    %v291 = vpop.trf.xlu0
    %v292 = vpop.trf.xlu0
    %v293 = vpop.trf.xlu0
    %v294 = vpop.trf.xlu0
    %v295 = vpop.trf.xlu0
    %v296 = vpop.trf.xlu0
    %v297 = vpop.trf.xlu0
    %v298 = vpop.trf.xlu0
    %299 = vset.pattern.permute.xlu0 0
    %300 = vperm.xlu0 %299, %v261
    %v301 = vpop.permute.xlu0 %300
    %v303 = vperm.slane %v283, 0
    %v304 = vadd.f32 %v301, %v303
    %vm305 = vcmp.gt.f32.partialorder %v304, 0.0
    %v306 = vmul.f32 %v304, 0.2
    %v307 = vsel %vm305, %v304, %v306
    %v308 = vadd.f32 %v307, %v29
    %v309 = vsel %vm35, %v308, -inf
    %310 = vmax.xlane.f32.xlu0 %v309
    %v311 = vpop.xlane.xlu0 %310
    %v312 = vsub.f32 %v308, %v311
    %v313 = vmul.f32 %v312, 1.442695
    %v314 = vpow.pop %v313
    %v315 = vsel %vm35, %v314, 0.0
    %316 = vadd.xlane.f32.xlu0 %v315
    %v317 = vpop.xlane.xlu0 %316
    %v318 = vrcp.pop %v317
    %v320 = vsel %vm35, %v314, 0
    %322 = vmatpush.msra.mxu0 0.0
    %323 = vmatpush.msra.mxu0 0.0
    %324 = vmatpush.msra.mxu0 0.0
    %325 = vmatpush.msra.mxu0 0.0
    %326 = vmatpush.msra.mxu0 0.0
    %327 = vmatpush.msra.mxu0 0.0
    %328 = vmatpush.msra.mxu0 0.0
    %329 = vmatpush.msra.mxu0 0.0
    %330 = vmatpush.msra.mxu0 0.0
    %331 = vmatpush.msra.mxu0 0.0
    %332 = vmatpush.msra.mxu0 0.0
    %333 = vmatpush.msra.mxu0 0.0
    %334 = vmatpush.msra.mxu0 0.0
    %335 = vmatpush.msra.mxu0 0.0
    %336 = vmatpush.msra.mxu0 0.0
    %337 = vmatpush.msra.mxu0 %v241
    %338 = vmatmul.f32.gmra.mxu0 %v320
    %v339 = vpop.f32.mrf.mxu0
    %v340 = vadd.f32 0.0, %v339
    %341 = vdwg.mxu0
    %v342 = vmul.f32 %v340, %v318
    %v343 = vadd.f32 %v342, %v190
    %vm344 = vcmp.gt.f32.partialorder %v343, 0.0
    %v345 = vmul.f32 %v343, 1.442695
    %v346 = vpow.pop %v345
    %v347 = vsub.f32 %v346, 1.0
    %v348 = vmul.f32 %v347, 1.6732632
    %v349 = vsel %vm344, %v343, %v348
    %v350 = vmul.f32 %v349, 1.050701
    %v351 = vadd.f32 %v190, %v350
    %v352 = vld [vmem:[%s5] sm:$0xff]
    %v353 = vld [vmem:[%s5 + $0x8] sm:$0xff]
    %v354 = vld [vmem:[%s5 + $0x10] sm:$0xff]
    %v355 = vld [vmem:[%s5 + $0x18] sm:$0xff]
    %v356 = vld [vmem:[%s5 + $0x20] sm:$0xff]
    %v357 = vld [vmem:[%s5 + $0x28] sm:$0xff]
    %v358 = vld [vmem:[%s5 + $0x30] sm:$0xff]
    %v359 = vld [vmem:[%s5 + $0x38] sm:$0xff]
    %v360 = vld [vmem:[%s5 + $0x40] sm:$0xff]
    %v361 = vld [vmem:[%s5 + $0x48] sm:$0xff]
    %v362 = vld [vmem:[%s5 + $0x50] sm:$0xff]
    %v363 = vld [vmem:[%s5 + $0x58] sm:$0xff]
    %v364 = vld [vmem:[%s5 + $0x60] sm:$0xff]
    %v365 = vld [vmem:[%s5 + $0x68] sm:$0xff]
    %v366 = vld [vmem:[%s5 + $0x70] sm:$0xff]
    %v367 = vld [vmem:[%s5 + $0x78] sm:$0xff]
    %v368 = vld [vmem:[#allocation2] sm:$0x1]
    %v370 = vrot.slane %v351, 7
    %372 = vmatpush.msra.mxu0 %v367
    %373 = vmatpush.msra.mxu0 %v366
    %374 = vmatpush.msra.mxu0 %v365
    %375 = vmatpush.msra.mxu0 %v364
    %376 = vmatpush.msra.mxu0 %v363
    %377 = vmatpush.msra.mxu0 %v362
    %378 = vmatpush.msra.mxu0 %v361
    %379 = vmatpush.msra.mxu0 %v360
    %380 = vmatpush.msra.mxu0 %v359
    %381 = vmatpush.msra.mxu0 %v358
    %382 = vmatpush.msra.mxu0 %v357
    %383 = vmatpush.msra.mxu0 %v356
    %384 = vmatpush.msra.mxu0 %v355
    %385 = vmatpush.msra.mxu0 %v354
    %386 = vmatpush.msra.mxu0 %v353
    %387 = vmatpush.msra.mxu0 %v352
    %388 = vmatmul.f32.gmra.mxu0 %v370
    %v389 = vpop.f32.mrf.mxu0
    %v390 = vadd.f32 %v368, %v389
    %391 = vdwg.mxu0
    %vm392 = vcmp.gt.f32.partialorder %v390, 0.0
    %v393 = vmul.f32 %v390, 0.01
    %v394 = vsel %vm392, %v390, %v393
    %vm395 = vcmask 0
    %396 = vst.msk [vmem:[#allocation3] sm:$0x1] %vm395, %v394
    // Predicated region
    $region30: #{model_forward.1} parent=1 // pred_check
      _
    $region31: #{model_forward.1} parent=1 // pred_check_branch
      %398 = sbr.rel (0) target = $region33
    $region32: #{model_forward.1} parent=1 // pred_region
      %400 = vsyncadd [#allocation4], 0
      %s402 = sshll.u32 [#allocation3], 4
      %s403 = int_to_ptr.vmem [resolvable:$true] %s402
      %s404 = sshll.u32 %s7, 4
      %s405 = int_to_ptr.hbm [resolvable:$true] %s404
      %407 = dma.vmem_to_hbm [thread:$0]  %s403, 16, %s405, [#allocation4]
    $region33: #{model_forward.1} parent=1 // pred_fallthru
      _
    // Predicated region
    $region34: #{model_forward.1} parent=1 // pred_check
      _
    $region35: #{model_forward.1} parent=1 // pred_check_branch
      %409 = sbr.rel (0) target = $region37
    $region36: #{model_forward.1} parent=1 // pred_region
      %411 = dma.done [#allocation4], 16
    $region37: #{model_forward.1} parent=1 // pred_fallthru
      _
    %412 = vsyncpa [#allocation4], 1

</llo_original>
